<compile_context>
chip_gen: v7x
topology: tpu7x:2x2x1
jax: 0.10.0
libtpu: 0.0.40
codegen_flags: <defaults>
</compile_context>

<pallas_src>
import jax
import jax.numpy as jnp
from jax.experimental import pallas as pl
from jax.experimental.pallas import tpu as pltpu

IN_DIM, H_DIM, OUT_DIM = 5, 10, 2
MAX_TB = 8192           # max batch-lane tile (columns per grid step)
Y_MAX = 10.0            # y_max = [10, 10]: both entries equal -> scalar


def _dense_fm(w_ref, b_ref, h, k_dim):
    """Feature-major dense layer: (n_out, k) @ (k, TB) + (n_out, 1).

    Unrolled as k broadcast multiply-adds on the VPU (exact f32)."""
    w = w_ref[...]                                   # tiny, VMEM-resident
    acc = b_ref[...] + w[:, 0:1] * h[0:1, :]
    for k in range(1, k_dim):
        acc = acc + w[:, k:k + 1] * h[k:k + 1, :]
    return acc


def _mlp_kernel(x_ref, w1_ref, b1_ref, w2_ref, b2_ref, w3_ref, b3_ref, o_ref):
    x = x_ref[...]                                                 # (5,  TB)
    h1 = jnp.maximum(_dense_fm(w1_ref, b1_ref, x, IN_DIM), 0.0)    # (10, TB)
    h2 = jnp.maximum(_dense_fm(w2_ref, b2_ref, h1, H_DIM), 0.0)    # (10, TB)
    h3 = jnp.tanh(_dense_fm(w3_ref, b3_ref, h2, H_DIM))            # (2,  TB)
    o_ref[...] = h3 * Y_MAX                                        # (2,  TB)


def prepare_params(params):
    """One-time transform of the Linear tensors into kernel operands.

    Transposes to feature-major (out_features, in_features), folds x_max into
    W1, reshapes biases to (out, 1) columns.  Call once, reuse every call."""
    w1, b1, w2, b2, w3, b3 = params
    x_max = jnp.array([1920.0, 1080.0, 1920.0, 1080.0, 20.0], jnp.float32)
    w1t = (w1.astype(jnp.float32) / x_max[:, None]).T      # (10, 5), folded
    w2t = w2.astype(jnp.float32).T                         # (10, 10)
    w3t = w3.astype(jnp.float32).T                         # (2, 10)
    return (w1t, b1.astype(jnp.float32)[:, None],
            w2t, b2.astype(jnp.float32)[:, None],
            w3t, b3.astype(jnp.float32)[:, None])


def _round_up(n, m):
    return -(-n // m) * m


def _batch_tile(B):
    if B <= 256:
        return B                                    # single full block
    # >= 2 grid steps (v7x megacore sharding), lane-aligned tiles, capped.
    return min(MAX_TB, _round_up(-(-B // 2), 128))


@jax.jit
def neural_network_forward(x, prepared):
    """x: (B, 5) float32 raw inputs. Returns logits (B, 2) float32."""
    B = x.shape[0]
    w1t, b1, w2t, b2, w3t, b3 = prepared
    x_t = x.astype(jnp.float32).T                   # (5, B) feature-major
    tb = _batch_tile(B)
    grid = (pl.cdiv(B, tb),)

    def resident(a):   # constant block index -> stays VMEM-resident, no re-DMA
        return pl.BlockSpec(a.shape, lambda i: (0, 0))

    out_t = pl.pallas_call(
        _mlp_kernel,
        out_shape=jax.ShapeDtypeStruct((OUT_DIM, B), jnp.float32),
        grid=grid,
        in_specs=[
            pl.BlockSpec((IN_DIM, tb), lambda i: (0, i)),   # x tile (5, tb)
            resident(w1t), resident(b1),
            resident(w2t), resident(b2),
            resident(w3t), resident(b3),
        ],
        out_specs=pl.BlockSpec((OUT_DIM, tb), lambda i: (0, i)),  # (2, tb)
        compiler_params=pltpu.CompilerParams(
            dimension_semantics=("parallel",)),
        cost_estimate=pl.CostEstimate(
            flops=2 * B * (IN_DIM * H_DIM + H_DIM * H_DIM + H_DIM * OUT_DIM),
            transcendentals=B * OUT_DIM,
            bytes_accessed=4 * (B * (IN_DIM + OUT_DIM) + 192),
        ),
    )(x_t, w1t, b1, w2t, b2, w3t, b3)
    return out_t.T                                   # (B, 2)


def init_params(key):
    """Deterministic init matching nn.Linear(5,10)/(10,10)/(10,2) shapes.

    Weights stored as (in_features, out_features) so the math reads x @ W."""
    k1, k2, k3, k4, k5, k6 = jax.random.split(key, 6)

    def linear(kw, kb, fan_in, fan_out):
        bound = 1.0 / jnp.sqrt(fan_in)
        w = jax.random.uniform(kw, (fan_in, fan_out), jnp.float32, -bound, bound)
        b = jax.random.uniform(kb, (fan_out,), jnp.float32, -bound, bound)
        return w, b

    w1, b1 = linear(k1, k2, IN_DIM, H_DIM)
    w2, b2 = linear(k3, k4, H_DIM, H_DIM)
    w3, b3 = linear(k5, k6, H_DIM, OUT_DIM)
    return (w1, b1, w2, b2, w3, b3)


def _reference(x, params):
    """Pure-JAX reference of the PyTorch forward (exact f32 matmuls)."""
    w1, b1, w2, b2, w3, b3 = params
    x_max = jnp.array([1920.0, 1080.0, 1920.0, 1080.0, 20.0], jnp.float32)
    y_max = jnp.array([10.0, 10.0], jnp.float32)
    hp = jax.lax.Precision.HIGHEST
    h = x / x_max
    h = jnp.maximum(jnp.dot(h, w1, precision=hp) + b1, 0.0)
    h = jnp.maximum(jnp.dot(h, w2, precision=hp) + b2, 0.0)
    return jnp.tanh(jnp.dot(h, w3, precision=hp) + b3) * y_max


if __name__ == "__main__":
    key = jax.random.PRNGKey(0)
    kp, kx1, kx2 = jax.random.split(key, 3)
    params = init_params(kp)
    prepared = prepare_params(params)    # fold / transpose once, reuse forever

    ranges = jnp.array([1920.0, 1080.0, 1920.0, 1080.0, 20.0], jnp.float32)

    # Small batch: single full-array block path.
    x_small = jax.random.uniform(kx1, (8, IN_DIM), jnp.float32) * ranges
    out_small = neural_network_forward(x_small, prepared)
    jax.block_until_ready(out_small)
    ref_small = _reference(x_small, params)
    assert out_small.shape == (8, OUT_DIM)
    # Kernel is exact-f32 VPU MACs; only tanh impl and x_max-fold rounding
    # differ from the reference -> tight tolerance.
    assert jnp.allclose(out_small, ref_small, rtol=1e-3, atol=1e-3), (
        out_small, ref_small)

    # Medium batch: multi-step grid (2 parallel steps) with a partial last
    # tile, exercising masked writeback of out-of-range lanes.
    x_med = jax.random.uniform(kx2, (300, IN_DIM), jnp.float32) * ranges
    out_med = neural_network_forward(x_med, prepared)
    jax.block_until_ready(out_med)
    ref_med = _reference(x_med, params)
    assert out_med.shape == (300, OUT_DIM)
    assert jnp.allclose(out_med, ref_med, rtol=1e-3, atol=1e-3)

    print("KERNEL_OK")
</pallas_src>

<mosaic_0001>
module attributes {stable_mosaic.version = 11 : i64} {
  func.func @_mlp_kernel(%arg0: i32, %arg1: memref<5x8xf32, #tpu.memory_space<vmem>>, %arg2: memref<10x5xf32, #tpu.memory_space<vmem>>, %arg3: memref<10x1xf32, #tpu.memory_space<vmem>>, %arg4: memref<10x10xf32, #tpu.memory_space<vmem>>, %arg5: memref<10x1xf32, #tpu.memory_space<vmem>>, %arg6: memref<2x10xf32, #tpu.memory_space<vmem>>, %arg7: memref<2x1xf32, #tpu.memory_space<vmem>>, %arg8: memref<2x8xf32, #tpu.memory_space<vmem>>) attributes {dimension_semantics = [#tpu.dimension_semantics<parallel>], iteration_bounds = array<i64: 1>, scalar_prefetch = 0 : i64, scratch_operands = 0 : i64, tpu.core_type = #tpu.core_type<tc>, window_params = [{transform_indices = @transform_0, window_bounds = array<i64: 5, 8>}, {pipeline_mode = #tpu.pipeline_mode<synchronous>, transform_indices = @transform_1, window_bounds = array<i64: 10, 5>}, {pipeline_mode = #tpu.pipeline_mode<synchronous>, transform_indices = @transform_2, window_bounds = array<i64: 10, 1>}, {pipeline_mode = #tpu.pipeline_mode<synchronous>, transform_indices = @transform_3, window_bounds = array<i64: 10, 10>}, {pipeline_mode = #tpu.pipeline_mode<synchronous>, transform_indices = @transform_4, window_bounds = array<i64: 10, 1>}, {pipeline_mode = #tpu.pipeline_mode<synchronous>, transform_indices = @transform_5, window_bounds = array<i64: 2, 10>}, {pipeline_mode = #tpu.pipeline_mode<synchronous>, transform_indices = @transform_6, window_bounds = array<i64: 2, 1>}, {transform_indices = @transform_7, window_bounds = array<i64: 2, 8>}]} {
    %c0 = arith.constant 0 : index
    %c0_0 = arith.constant 0 : index
    %0 = vector.load %arg1[%c0, %c0_0] : memref<5x8xf32, #tpu.memory_space<vmem>>, vector<5x8xf32>
    %c0_1 = arith.constant 0 : index
    %c0_2 = arith.constant 0 : index
    %1 = vector.load %arg2[%c0_1, %c0_2] : memref<10x5xf32, #tpu.memory_space<vmem>>, vector<10x5xf32>
    %c0_3 = arith.constant 0 : index
    %c0_4 = arith.constant 0 : index
    %2 = vector.load %arg3[%c0_3, %c0_4] : memref<10x1xf32, #tpu.memory_space<vmem>>, vector<10x1xf32>
    %3 = vector.extract_strided_slice %1 {offsets = [0, 0], sizes = [10, 1], strides = [1, 1]} : vector<10x5xf32> to vector<10x1xf32>
    %4 = vector.extract_strided_slice %0 {offsets = [0, 0], sizes = [1, 8], strides = [1, 1]} : vector<5x8xf32> to vector<1x8xf32>
    %5 = vector.broadcast %3 : vector<10x1xf32> to vector<10x8xf32>
    %6 = vector.broadcast %4 : vector<1x8xf32> to vector<10x8xf32>
    %7 = arith.mulf %5, %6 : vector<10x8xf32>
    %8 = vector.broadcast %2 : vector<10x1xf32> to vector<10x8xf32>
    %9 = arith.addf %8, %7 : vector<10x8xf32>
    %10 = vector.extract_strided_slice %1 {offsets = [0, 1], sizes = [10, 1], strides = [1, 1]} : vector<10x5xf32> to vector<10x1xf32>
    %11 = vector.extract_strided_slice %0 {offsets = [1, 0], sizes = [1, 8], strides = [1, 1]} : vector<5x8xf32> to vector<1x8xf32>
    %12 = vector.broadcast %10 : vector<10x1xf32> to vector<10x8xf32>
    %13 = vector.broadcast %11 : vector<1x8xf32> to vector<10x8xf32>
    %14 = arith.mulf %12, %13 : vector<10x8xf32>
    %15 = arith.addf %9, %14 : vector<10x8xf32>
    %16 = vector.extract_strided_slice %1 {offsets = [0, 2], sizes = [10, 1], strides = [1, 1]} : vector<10x5xf32> to vector<10x1xf32>
    %17 = vector.extract_strided_slice %0 {offsets = [2, 0], sizes = [1, 8], strides = [1, 1]} : vector<5x8xf32> to vector<1x8xf32>
    %18 = vector.broadcast %16 : vector<10x1xf32> to vector<10x8xf32>
    %19 = vector.broadcast %17 : vector<1x8xf32> to vector<10x8xf32>
    %20 = arith.mulf %18, %19 : vector<10x8xf32>
    %21 = arith.addf %15, %20 : vector<10x8xf32>
    %22 = vector.extract_strided_slice %1 {offsets = [0, 3], sizes = [10, 1], strides = [1, 1]} : vector<10x5xf32> to vector<10x1xf32>
    %23 = vector.extract_strided_slice %0 {offsets = [3, 0], sizes = [1, 8], strides = [1, 1]} : vector<5x8xf32> to vector<1x8xf32>
    %24 = vector.broadcast %22 : vector<10x1xf32> to vector<10x8xf32>
    %25 = vector.broadcast %23 : vector<1x8xf32> to vector<10x8xf32>
    %26 = arith.mulf %24, %25 : vector<10x8xf32>
    %27 = arith.addf %21, %26 : vector<10x8xf32>
    %28 = vector.extract_strided_slice %1 {offsets = [0, 4], sizes = [10, 1], strides = [1, 1]} : vector<10x5xf32> to vector<10x1xf32>
    %29 = vector.extract_strided_slice %0 {offsets = [4, 0], sizes = [1, 8], strides = [1, 1]} : vector<5x8xf32> to vector<1x8xf32>
    %30 = vector.broadcast %28 : vector<10x1xf32> to vector<10x8xf32>
    %31 = vector.broadcast %29 : vector<1x8xf32> to vector<10x8xf32>
    %32 = arith.mulf %30, %31 : vector<10x8xf32>
    %33 = arith.addf %27, %32 : vector<10x8xf32>
    %cst = arith.constant 0.000000e+00 : f32
    %34 = vector.broadcast %cst : f32 to vector<10x8xf32>
    %35 = arith.maximumf %33, %34 : vector<10x8xf32>
    %c0_5 = arith.constant 0 : index
    %c0_6 = arith.constant 0 : index
    %36 = vector.load %arg4[%c0_5, %c0_6] : memref<10x10xf32, #tpu.memory_space<vmem>>, vector<10x10xf32>
    %c0_7 = arith.constant 0 : index
    %c0_8 = arith.constant 0 : index
    %37 = vector.load %arg5[%c0_7, %c0_8] : memref<10x1xf32, #tpu.memory_space<vmem>>, vector<10x1xf32>
    %38 = vector.extract_strided_slice %36 {offsets = [0, 0], sizes = [10, 1], strides = [1, 1]} : vector<10x10xf32> to vector<10x1xf32>
    %39 = vector.extract_strided_slice %35 {offsets = [0, 0], sizes = [1, 8], strides = [1, 1]} : vector<10x8xf32> to vector<1x8xf32>
    %40 = vector.broadcast %38 : vector<10x1xf32> to vector<10x8xf32>
    %41 = vector.broadcast %39 : vector<1x8xf32> to vector<10x8xf32>
    %42 = arith.mulf %40, %41 : vector<10x8xf32>
    %43 = vector.broadcast %37 : vector<10x1xf32> to vector<10x8xf32>
    %44 = arith.addf %43, %42 : vector<10x8xf32>
    %45 = vector.extract_strided_slice %36 {offsets = [0, 1], sizes = [10, 1], strides = [1, 1]} : vector<10x10xf32> to vector<10x1xf32>
    %46 = vector.extract_strided_slice %35 {offsets = [1, 0], sizes = [1, 8], strides = [1, 1]} : vector<10x8xf32> to vector<1x8xf32>
    %47 = vector.broadcast %45 : vector<10x1xf32> to vector<10x8xf32>
    %48 = vector.broadcast %46 : vector<1x8xf32> to vector<10x8xf32>
    %49 = arith.mulf %47, %48 : vector<10x8xf32>
    %50 = arith.addf %44, %49 : vector<10x8xf32>
    %51 = vector.extract_strided_slice %36 {offsets = [0, 2], sizes = [10, 1], strides = [1, 1]} : vector<10x10xf32> to vector<10x1xf32>
    %52 = vector.extract_strided_slice %35 {offsets = [2, 0], sizes = [1, 8], strides = [1, 1]} : vector<10x8xf32> to vector<1x8xf32>
    %53 = vector.broadcast %51 : vector<10x1xf32> to vector<10x8xf32>
    %54 = vector.broadcast %52 : vector<1x8xf32> to vector<10x8xf32>
    %55 = arith.mulf %53, %54 : vector<10x8xf32>
    %56 = arith.addf %50, %55 : vector<10x8xf32>
    %57 = vector.extract_strided_slice %36 {offsets = [0, 3], sizes = [10, 1], strides = [1, 1]} : vector<10x10xf32> to vector<10x1xf32>
    %58 = vector.extract_strided_slice %35 {offsets = [3, 0], sizes = [1, 8], strides = [1, 1]} : vector<10x8xf32> to vector<1x8xf32>
    %59 = vector.broadcast %57 : vector<10x1xf32> to vector<10x8xf32>
    %60 = vector.broadcast %58 : vector<1x8xf32> to vector<10x8xf32>
    %61 = arith.mulf %59, %60 : vector<10x8xf32>
    %62 = arith.addf %56, %61 : vector<10x8xf32>
    %63 = vector.extract_strided_slice %36 {offsets = [0, 4], sizes = [10, 1], strides = [1, 1]} : vector<10x10xf32> to vector<10x1xf32>
    %64 = vector.extract_strided_slice %35 {offsets = [4, 0], sizes = [1, 8], strides = [1, 1]} : vector<10x8xf32> to vector<1x8xf32>
    %65 = vector.broadcast %63 : vector<10x1xf32> to vector<10x8xf32>
    %66 = vector.broadcast %64 : vector<1x8xf32> to vector<10x8xf32>
    %67 = arith.mulf %65, %66 : vector<10x8xf32>
    %68 = arith.addf %62, %67 : vector<10x8xf32>
    %69 = vector.extract_strided_slice %36 {offsets = [0, 5], sizes = [10, 1], strides = [1, 1]} : vector<10x10xf32> to vector<10x1xf32>
    %70 = vector.extract_strided_slice %35 {offsets = [5, 0], sizes = [1, 8], strides = [1, 1]} : vector<10x8xf32> to vector<1x8xf32>
    %71 = vector.broadcast %69 : vector<10x1xf32> to vector<10x8xf32>
    %72 = vector.broadcast %70 : vector<1x8xf32> to vector<10x8xf32>
    %73 = arith.mulf %71, %72 : vector<10x8xf32>
    %74 = arith.addf %68, %73 : vector<10x8xf32>
    %75 = vector.extract_strided_slice %36 {offsets = [0, 6], sizes = [10, 1], strides = [1, 1]} : vector<10x10xf32> to vector<10x1xf32>
    %76 = vector.extract_strided_slice %35 {offsets = [6, 0], sizes = [1, 8], strides = [1, 1]} : vector<10x8xf32> to vector<1x8xf32>
    %77 = vector.broadcast %75 : vector<10x1xf32> to vector<10x8xf32>
    %78 = vector.broadcast %76 : vector<1x8xf32> to vector<10x8xf32>
    %79 = arith.mulf %77, %78 : vector<10x8xf32>
    %80 = arith.addf %74, %79 : vector<10x8xf32>
    %81 = vector.extract_strided_slice %36 {offsets = [0, 7], sizes = [10, 1], strides = [1, 1]} : vector<10x10xf32> to vector<10x1xf32>
    %82 = vector.extract_strided_slice %35 {offsets = [7, 0], sizes = [1, 8], strides = [1, 1]} : vector<10x8xf32> to vector<1x8xf32>
    %83 = vector.broadcast %81 : vector<10x1xf32> to vector<10x8xf32>
    %84 = vector.broadcast %82 : vector<1x8xf32> to vector<10x8xf32>
    %85 = arith.mulf %83, %84 : vector<10x8xf32>
    %86 = arith.addf %80, %85 : vector<10x8xf32>
    %87 = vector.extract_strided_slice %36 {offsets = [0, 8], sizes = [10, 1], strides = [1, 1]} : vector<10x10xf32> to vector<10x1xf32>
    %88 = vector.extract_strided_slice %35 {offsets = [8, 0], sizes = [1, 8], strides = [1, 1]} : vector<10x8xf32> to vector<1x8xf32>
    %89 = vector.broadcast %87 : vector<10x1xf32> to vector<10x8xf32>
    %90 = vector.broadcast %88 : vector<1x8xf32> to vector<10x8xf32>
    %91 = arith.mulf %89, %90 : vector<10x8xf32>
    %92 = arith.addf %86, %91 : vector<10x8xf32>
    %93 = vector.extract_strided_slice %36 {offsets = [0, 9], sizes = [10, 1], strides = [1, 1]} : vector<10x10xf32> to vector<10x1xf32>
    %94 = vector.extract_strided_slice %35 {offsets = [9, 0], sizes = [1, 8], strides = [1, 1]} : vector<10x8xf32> to vector<1x8xf32>
    %95 = vector.broadcast %93 : vector<10x1xf32> to vector<10x8xf32>
    %96 = vector.broadcast %94 : vector<1x8xf32> to vector<10x8xf32>
    %97 = arith.mulf %95, %96 : vector<10x8xf32>
    %98 = arith.addf %92, %97 : vector<10x8xf32>
    %cst_9 = arith.constant 0.000000e+00 : f32
    %99 = vector.broadcast %cst_9 : f32 to vector<10x8xf32>
    %100 = arith.maximumf %98, %99 : vector<10x8xf32>
    %c0_10 = arith.constant 0 : index
    %c0_11 = arith.constant 0 : index
    %101 = vector.load %arg6[%c0_10, %c0_11] : memref<2x10xf32, #tpu.memory_space<vmem>>, vector<2x10xf32>
    %c0_12 = arith.constant 0 : index
    %c0_13 = arith.constant 0 : index
    %102 = vector.load %arg7[%c0_12, %c0_13] : memref<2x1xf32, #tpu.memory_space<vmem>>, vector<2x1xf32>
    %103 = vector.extract_strided_slice %101 {offsets = [0, 0], sizes = [2, 1], strides = [1, 1]} : vector<2x10xf32> to vector<2x1xf32>
    %104 = vector.extract_strided_slice %100 {offsets = [0, 0], sizes = [1, 8], strides = [1, 1]} : vector<10x8xf32> to vector<1x8xf32>
    %105 = vector.broadcast %103 : vector<2x1xf32> to vector<2x8xf32>
    %106 = vector.broadcast %104 : vector<1x8xf32> to vector<2x8xf32>
    %107 = arith.mulf %105, %106 : vector<2x8xf32>
    %108 = vector.broadcast %102 : vector<2x1xf32> to vector<2x8xf32>
    %109 = arith.addf %108, %107 : vector<2x8xf32>
    %110 = vector.extract_strided_slice %101 {offsets = [0, 1], sizes = [2, 1], strides = [1, 1]} : vector<2x10xf32> to vector<2x1xf32>
    %111 = vector.extract_strided_slice %100 {offsets = [1, 0], sizes = [1, 8], strides = [1, 1]} : vector<10x8xf32> to vector<1x8xf32>
    %112 = vector.broadcast %110 : vector<2x1xf32> to vector<2x8xf32>
    %113 = vector.broadcast %111 : vector<1x8xf32> to vector<2x8xf32>
    %114 = arith.mulf %112, %113 : vector<2x8xf32>
    %115 = arith.addf %109, %114 : vector<2x8xf32>
    %116 = vector.extract_strided_slice %101 {offsets = [0, 2], sizes = [2, 1], strides = [1, 1]} : vector<2x10xf32> to vector<2x1xf32>
    %117 = vector.extract_strided_slice %100 {offsets = [2, 0], sizes = [1, 8], strides = [1, 1]} : vector<10x8xf32> to vector<1x8xf32>
    %118 = vector.broadcast %116 : vector<2x1xf32> to vector<2x8xf32>
    %119 = vector.broadcast %117 : vector<1x8xf32> to vector<2x8xf32>
    %120 = arith.mulf %118, %119 : vector<2x8xf32>
    %121 = arith.addf %115, %120 : vector<2x8xf32>
    %122 = vector.extract_strided_slice %101 {offsets = [0, 3], sizes = [2, 1], strides = [1, 1]} : vector<2x10xf32> to vector<2x1xf32>
    %123 = vector.extract_strided_slice %100 {offsets = [3, 0], sizes = [1, 8], strides = [1, 1]} : vector<10x8xf32> to vector<1x8xf32>
    %124 = vector.broadcast %122 : vector<2x1xf32> to vector<2x8xf32>
    %125 = vector.broadcast %123 : vector<1x8xf32> to vector<2x8xf32>
    %126 = arith.mulf %124, %125 : vector<2x8xf32>
    %127 = arith.addf %121, %126 : vector<2x8xf32>
    %128 = vector.extract_strided_slice %101 {offsets = [0, 4], sizes = [2, 1], strides = [1, 1]} : vector<2x10xf32> to vector<2x1xf32>
    %129 = vector.extract_strided_slice %100 {offsets = [4, 0], sizes = [1, 8], strides = [1, 1]} : vector<10x8xf32> to vector<1x8xf32>
    %130 = vector.broadcast %128 : vector<2x1xf32> to vector<2x8xf32>
    %131 = vector.broadcast %129 : vector<1x8xf32> to vector<2x8xf32>
    %132 = arith.mulf %130, %131 : vector<2x8xf32>
    %133 = arith.addf %127, %132 : vector<2x8xf32>
    %134 = vector.extract_strided_slice %101 {offsets = [0, 5], sizes = [2, 1], strides = [1, 1]} : vector<2x10xf32> to vector<2x1xf32>
    %135 = vector.extract_strided_slice %100 {offsets = [5, 0], sizes = [1, 8], strides = [1, 1]} : vector<10x8xf32> to vector<1x8xf32>
    %136 = vector.broadcast %134 : vector<2x1xf32> to vector<2x8xf32>
    %137 = vector.broadcast %135 : vector<1x8xf32> to vector<2x8xf32>
    %138 = arith.mulf %136, %137 : vector<2x8xf32>
    %139 = arith.addf %133, %138 : vector<2x8xf32>
    %140 = vector.extract_strided_slice %101 {offsets = [0, 6], sizes = [2, 1], strides = [1, 1]} : vector<2x10xf32> to vector<2x1xf32>
    %141 = vector.extract_strided_slice %100 {offsets = [6, 0], sizes = [1, 8], strides = [1, 1]} : vector<10x8xf32> to vector<1x8xf32>
    %142 = vector.broadcast %140 : vector<2x1xf32> to vector<2x8xf32>
    %143 = vector.broadcast %141 : vector<1x8xf32> to vector<2x8xf32>
    %144 = arith.mulf %142, %143 : vector<2x8xf32>
    %145 = arith.addf %139, %144 : vector<2x8xf32>
    %146 = vector.extract_strided_slice %101 {offsets = [0, 7], sizes = [2, 1], strides = [1, 1]} : vector<2x10xf32> to vector<2x1xf32>
    %147 = vector.extract_strided_slice %100 {offsets = [7, 0], sizes = [1, 8], strides = [1, 1]} : vector<10x8xf32> to vector<1x8xf32>
    %148 = vector.broadcast %146 : vector<2x1xf32> to vector<2x8xf32>
    %149 = vector.broadcast %147 : vector<1x8xf32> to vector<2x8xf32>
    %150 = arith.mulf %148, %149 : vector<2x8xf32>
    %151 = arith.addf %145, %150 : vector<2x8xf32>
    %152 = vector.extract_strided_slice %101 {offsets = [0, 8], sizes = [2, 1], strides = [1, 1]} : vector<2x10xf32> to vector<2x1xf32>
    %153 = vector.extract_strided_slice %100 {offsets = [8, 0], sizes = [1, 8], strides = [1, 1]} : vector<10x8xf32> to vector<1x8xf32>
    %154 = vector.broadcast %152 : vector<2x1xf32> to vector<2x8xf32>
    %155 = vector.broadcast %153 : vector<1x8xf32> to vector<2x8xf32>
    %156 = arith.mulf %154, %155 : vector<2x8xf32>
    %157 = arith.addf %151, %156 : vector<2x8xf32>
    %158 = vector.extract_strided_slice %101 {offsets = [0, 9], sizes = [2, 1], strides = [1, 1]} : vector<2x10xf32> to vector<2x1xf32>
    %159 = vector.extract_strided_slice %100 {offsets = [9, 0], sizes = [1, 8], strides = [1, 1]} : vector<10x8xf32> to vector<1x8xf32>
    %160 = vector.broadcast %158 : vector<2x1xf32> to vector<2x8xf32>
    %161 = vector.broadcast %159 : vector<1x8xf32> to vector<2x8xf32>
    %162 = arith.mulf %160, %161 : vector<2x8xf32>
    %163 = arith.addf %157, %162 : vector<2x8xf32>
    %164 = math.tanh %163 : vector<2x8xf32>
    %cst_14 = arith.constant 1.000000e+01 : f32
    %165 = vector.broadcast %cst_14 : f32 to vector<2x8xf32>
    %166 = arith.mulf %164, %165 : vector<2x8xf32>
    %c0_15 = arith.constant 0 : index
    %c0_16 = arith.constant 0 : index
    %167 = vector.load %arg8[%c0_15, %c0_16] : memref<2x8xf32, #tpu.memory_space<vmem>>, vector<2x8xf32>
    tpu.vector_store %arg8[%c0_15, %c0_16], %166 {strides = array<i32>} : memref<2x8xf32, #tpu.memory_space<vmem>>, vector<2x8xf32>,
    return
  }
  func.func @transform_0(%arg0: i32) -> (i32, i32) {
    %c0_i32 = arith.constant 0 : i32
    %c0_i32_0 = arith.constant 0 : i32
    return %c0_i32, %arg0 : i32, i32
  }
  func.func @transform_1(%arg0: i32) -> (i32, i32) {
    %c0_i32 = arith.constant 0 : i32
    %c0_i32_0 = arith.constant 0 : i32
    %c0_i32_1 = arith.constant 0 : i32
    return %c0_i32, %c0_i32_0 : i32, i32
  }
  func.func @transform_2(%arg0: i32) -> (i32, i32) {
    %c0_i32 = arith.constant 0 : i32
    %c0_i32_0 = arith.constant 0 : i32
    %c0_i32_1 = arith.constant 0 : i32
    return %c0_i32, %c0_i32_0 : i32, i32
  }
  func.func @transform_3(%arg0: i32) -> (i32, i32) {
    %c0_i32 = arith.constant 0 : i32
    %c0_i32_0 = arith.constant 0 : i32
    %c0_i32_1 = arith.constant 0 : i32
    return %c0_i32, %c0_i32_0 : i32, i32
  }
  func.func @transform_4(%arg0: i32) -> (i32, i32) {
    %c0_i32 = arith.constant 0 : i32
    %c0_i32_0 = arith.constant 0 : i32
    %c0_i32_1 = arith.constant 0 : i32
    return %c0_i32, %c0_i32_0 : i32, i32
  }
  func.func @transform_5(%arg0: i32) -> (i32, i32) {
    %c0_i32 = arith.constant 0 : i32
    %c0_i32_0 = arith.constant 0 : i32
    %c0_i32_1 = arith.constant 0 : i32
    return %c0_i32, %c0_i32_0 : i32, i32
  }
  func.func @transform_6(%arg0: i32) -> (i32, i32) {
    %c0_i32 = arith.constant 0 : i32
    %c0_i32_0 = arith.constant 0 : i32
    %c0_i32_1 = arith.constant 0 : i32
    return %c0_i32, %c0_i32_0 : i32, i32
  }
  func.func @transform_7(%arg0: i32) -> (i32, i32) {
    %c0_i32 = arith.constant 0 : i32
    %c0_i32_0 = arith.constant 0 : i32
    return %c0_i32, %arg0 : i32, i32
  }
}

</mosaic_0001>

<llo_original>
// kernel: neural_network_forward.1
$region0: #{neural_network_forward.1}
  #allocation0 [shape = 'u32[]', space=smem, size = 0x4, offset = 0x4, fixed_abs, tag = 'smem constant byte address 0x4 - core index']
  #allocation1 [shape = 'u32[144,128]{1,0:T(1,128)}', space=vmem, size = 0x12000, scoped, tag = 'internal scratch']
  %s0 = inlined_call_operand.vmem [shape: f32[5,8], index: 0, kind: input, shape index: {}]
  %s1 = inlined_call_operand.vmem [shape: f32[10,5], index: 1, kind: input, shape index: {}]
  %s2 = inlined_call_operand.vmem [shape: f32[10,1], index: 2, kind: input, shape index: {}]
  %s3 = inlined_call_operand.vmem [shape: f32[10,10], index: 3, kind: input, shape index: {}]
  %s4 = inlined_call_operand.vmem [shape: f32[10,1], index: 4, kind: input, shape index: {}]
  %s5 = inlined_call_operand.vmem [shape: f32[2,10], index: 5, kind: input, shape index: {}]
  %s6 = inlined_call_operand.vmem [shape: f32[2,1], index: 6, kind: input, shape index: {}]
  %s7 = inlined_call_operand.hbm [shape: f32[2,8], index: 7, kind: output, shape index: {}]
  %s8 = sld [smem:[#allocation0]]
  $region38: #{neural_network_forward.1} parent=0
    _
  %s10 = ssub.s32 1, %s8
  %s11 = scalar_select 0, %s10, %s8
  $region1: #{neural_network_forward.1} parent=0
    #allocation2 [shape = 'u8[1024]{0}', space=vmem, size = 0x400, scoped, tag = 'output window, operand 0, single buffered']
    #allocation3 [shape = 's32[1]{0}', space=sflag, size = 0x4, scoped, tag = 'scoped memory for neural_network_forward.1']
    %12 = vsyncpa [#allocation3], 0
    // Predicated region
    $region2: #{neural_network_forward.1} parent=1 // pred_check
      _
    $region3: #{neural_network_forward.1} parent=1 // pred_check_branch
      %14 = sbr.rel (0) target = $region5
    $region4: #{neural_network_forward.1} parent=1 // pred_region
      _
    $region5: #{neural_network_forward.1} parent=1 // pred_fallthru
      _
    // Predicated region
    $region6: #{neural_network_forward.1} parent=1 // pred_check
      _
    $region7: #{neural_network_forward.1} parent=1 // pred_check_branch
      %16 = sbr.rel (0) target = $region9
    $region8: #{neural_network_forward.1} parent=1 // pred_region
      _
    $region9: #{neural_network_forward.1} parent=1 // pred_fallthru
      _
    // Predicated region
    $region10: #{neural_network_forward.1} parent=1 // pred_check
      _
    $region11: #{neural_network_forward.1} parent=1 // pred_check_branch
      %18 = sbr.rel (0) target = $region13
    $region12: #{neural_network_forward.1} parent=1 // pred_region
      _
    $region13: #{neural_network_forward.1} parent=1 // pred_fallthru
      _
    // Predicated region
    $region14: #{neural_network_forward.1} parent=1 // pred_check
      _
    $region15: #{neural_network_forward.1} parent=1 // pred_check_branch
      %20 = sbr.rel (0) target = $region17
    $region16: #{neural_network_forward.1} parent=1 // pred_region
      _
    $region17: #{neural_network_forward.1} parent=1 // pred_fallthru
      _
    // Predicated region
    $region18: #{neural_network_forward.1} parent=1 // pred_check
      _
    $region19: #{neural_network_forward.1} parent=1 // pred_check_branch
      %22 = sbr.rel (0) target = $region21
    $region20: #{neural_network_forward.1} parent=1 // pred_region
      _
    $region21: #{neural_network_forward.1} parent=1 // pred_fallthru
      _
    // Predicated region
    $region22: #{neural_network_forward.1} parent=1 // pred_check
      _
    $region23: #{neural_network_forward.1} parent=1 // pred_check_branch
      %24 = sbr.rel (0) target = $region25
    $region24: #{neural_network_forward.1} parent=1 // pred_region
      _
    $region25: #{neural_network_forward.1} parent=1 // pred_fallthru
      _
    // Predicated region
    $region26: #{neural_network_forward.1} parent=1 // pred_check
      _
    $region27: #{neural_network_forward.1} parent=1 // pred_check_branch
      %26 = sbr.rel (0) target = $region29
    $region28: #{neural_network_forward.1} parent=1 // pred_region
      _
    $region29: #{neural_network_forward.1} parent=1 // pred_fallthru
      _
    %v27 = vld [vmem:[%s0] sm:$0x1f]
    %v28 = vld [vmem:[%s1] sm:$0xff]
    %v29 = vld [vmem:[%s1 + $0x8] sm:$0x3]
    %v30 = vld [vmem:[%s2] sm:$0xff]
    %v31 = vld [vmem:[%s2 + $0x8] sm:$0x3]
    %33 = vset.pattern.permute.xlu0 0
    %34 = vperm.xlu0 %33, %v28
    %v35 = vpop.permute.xlu0 %34
    %38 = vset.pattern.permute.xlu0 0
    %39 = vperm.xlu0 %38, %v29
    %v40 = vpop.permute.xlu0 %39
    %v42 = vlaneseq
    %v43 = vshrl.u32 %v42, 7
    %v44 = vsub.s32 0, %v43
    %v45 = vrot.slane %v27, %v44
    %v46 = vmul.f32 %v35, %v45
    %v47 = vmul.f32 %v40, %v45
    %49 = vset.pattern.permute.xlu0 0
    %50 = vperm.xlu0 %49, %v30
    %v51 = vpop.permute.xlu0 %50
    %54 = vset.pattern.permute.xlu0 0
    %55 = vperm.xlu0 %54, %v31
    %v56 = vpop.permute.xlu0 %55
    %v58 = vadd.f32 %v51, %v46
    %v59 = vadd.f32 %v56, %v47
    %60 = vset.pattern.permute.xlu0 1
    %61 = vperm.xlu0 %60, %v28
    %v62 = vpop.permute.xlu0 %61
    %64 = vset.pattern.permute.xlu0 1
    %65 = vperm.xlu0 %64, %v29
    %v66 = vpop.permute.xlu0 %65
    %v68 = vlaneseq
    %v69 = vshrl.u32 %v68, 7
    %v70 = vsub.s32 1, %v69
    %v71 = vrot.slane %v27, %v70
    %v72 = vmul.f32 %v62, %v71
    %v73 = vmul.f32 %v66, %v71
    %v74 = vadd.f32 %v58, %v72
    %v75 = vadd.f32 %v59, %v73
    %76 = vset.pattern.permute.xlu0 2
    %77 = vperm.xlu0 %76, %v28
    %v78 = vpop.permute.xlu0 %77
    %80 = vset.pattern.permute.xlu0 2
    %81 = vperm.xlu0 %80, %v29
    %v82 = vpop.permute.xlu0 %81
    %v84 = vlaneseq
    %v85 = vshrl.u32 %v84, 7
    %v86 = vsub.s32 2, %v85
    %v87 = vrot.slane %v27, %v86
    %v88 = vmul.f32 %v78, %v87
    %v89 = vmul.f32 %v82, %v87
    %v90 = vadd.f32 %v74, %v88
    %v91 = vadd.f32 %v75, %v89
    %92 = vset.pattern.permute.xlu0 3
    %93 = vperm.xlu0 %92, %v28
    %v94 = vpop.permute.xlu0 %93
    %96 = vset.pattern.permute.xlu0 3
    %97 = vperm.xlu0 %96, %v29
    %v98 = vpop.permute.xlu0 %97
    %v100 = vlaneseq
    %v101 = vshrl.u32 %v100, 7
    %v102 = vsub.s32 3, %v101
    %v103 = vrot.slane %v27, %v102
    %v104 = vmul.f32 %v94, %v103
    %v105 = vmul.f32 %v98, %v103
    %v106 = vadd.f32 %v90, %v104
    %v107 = vadd.f32 %v91, %v105
    %108 = vset.pattern.permute.xlu0 4
    %109 = vperm.xlu0 %108, %v28
    %v110 = vpop.permute.xlu0 %109
    %112 = vset.pattern.permute.xlu0 4
    %113 = vperm.xlu0 %112, %v29
    %v114 = vpop.permute.xlu0 %113
    %v116 = vlaneseq
    %v117 = vshrl.u32 %v116, 7
    %v118 = vsub.s32 4, %v117
    %v119 = vrot.slane %v27, %v118
    %v120 = vmul.f32 %v110, %v119
    %v121 = vmul.f32 %v114, %v119
    %v122 = vadd.f32 %v106, %v120
    %v123 = vadd.f32 %v107, %v121
    %v124 = vmax.f32 %v122, 0.0
    %v125 = vmax.f32 %v123, 0.0
    %v126 = vld [vmem:[%s3] sm:$0xff]
    %v127 = vld [vmem:[%s3 + $0x8] sm:$0x3]
    %v128 = vld [vmem:[%s4] sm:$0xff]
    %v129 = vld [vmem:[%s4 + $0x8] sm:$0x3]
    %131 = vset.pattern.permute.xlu0 0
    %132 = vperm.xlu0 %131, %v126
    %v133 = vpop.permute.xlu0 %132
    %136 = vset.pattern.permute.xlu0 0
    %137 = vperm.xlu0 %136, %v127
    %v138 = vpop.permute.xlu0 %137
    %v140 = vlaneseq
    %v141 = vshrl.u32 %v140, 7
    %v142 = vsub.s32 0, %v141
    %v143 = vrot.slane %v124, %v142
    %v144 = vmul.f32 %v133, %v143
    %v145 = vmul.f32 %v138, %v143
    %147 = vset.pattern.permute.xlu0 0
    %148 = vperm.xlu0 %147, %v128
    %v149 = vpop.permute.xlu0 %148
    %152 = vset.pattern.permute.xlu0 0
    %153 = vperm.xlu0 %152, %v129
    %v154 = vpop.permute.xlu0 %153
    %v156 = vadd.f32 %v149, %v144
    %v157 = vadd.f32 %v154, %v145
    %158 = vset.pattern.permute.xlu0 1
    %159 = vperm.xlu0 %158, %v126
    %v160 = vpop.permute.xlu0 %159
    %162 = vset.pattern.permute.xlu0 1
    %163 = vperm.xlu0 %162, %v127
    %v164 = vpop.permute.xlu0 %163
    %v166 = vlaneseq
    %v167 = vshrl.u32 %v166, 7
    %v168 = vsub.s32 1, %v167
    %v169 = vrot.slane %v124, %v168
    %v170 = vmul.f32 %v160, %v169
    %v171 = vmul.f32 %v164, %v169
    %v172 = vadd.f32 %v156, %v170
    %v173 = vadd.f32 %v157, %v171
    %174 = vset.pattern.permute.xlu0 2
    %175 = vperm.xlu0 %174, %v126
    %v176 = vpop.permute.xlu0 %175
    %178 = vset.pattern.permute.xlu0 2
    %179 = vperm.xlu0 %178, %v127
    %v180 = vpop.permute.xlu0 %179
    %v182 = vlaneseq
    %v183 = vshrl.u32 %v182, 7
    %v184 = vsub.s32 2, %v183
    %v185 = vrot.slane %v124, %v184
    %v186 = vmul.f32 %v176, %v185
    %v187 = vmul.f32 %v180, %v185
    %v188 = vadd.f32 %v172, %v186
    %v189 = vadd.f32 %v173, %v187
    %190 = vset.pattern.permute.xlu0 3
    %191 = vperm.xlu0 %190, %v126
    %v192 = vpop.permute.xlu0 %191
    %194 = vset.pattern.permute.xlu0 3
    %195 = vperm.xlu0 %194, %v127
    %v196 = vpop.permute.xlu0 %195
    %v198 = vlaneseq
    %v199 = vshrl.u32 %v198, 7
    %v200 = vsub.s32 3, %v199
    %v201 = vrot.slane %v124, %v200
    %v202 = vmul.f32 %v192, %v201
    %v203 = vmul.f32 %v196, %v201
    %v204 = vadd.f32 %v188, %v202
    %v205 = vadd.f32 %v189, %v203
    %206 = vset.pattern.permute.xlu0 4
    %207 = vperm.xlu0 %206, %v126
    %v208 = vpop.permute.xlu0 %207
    %210 = vset.pattern.permute.xlu0 4
    %211 = vperm.xlu0 %210, %v127
    %v212 = vpop.permute.xlu0 %211
    %v214 = vlaneseq
    %v215 = vshrl.u32 %v214, 7
    %v216 = vsub.s32 4, %v215
    %v217 = vrot.slane %v124, %v216
    %v218 = vmul.f32 %v208, %v217
    %v219 = vmul.f32 %v212, %v217
    %v220 = vadd.f32 %v204, %v218
    %v221 = vadd.f32 %v205, %v219
    %222 = vset.pattern.permute.xlu0 5
    %223 = vperm.xlu0 %222, %v126
    %v224 = vpop.permute.xlu0 %223
    %226 = vset.pattern.permute.xlu0 5
    %227 = vperm.xlu0 %226, %v127
    %v228 = vpop.permute.xlu0 %227
    %v230 = vlaneseq
    %v231 = vshrl.u32 %v230, 7
    %v232 = vsub.s32 5, %v231
    %v233 = vrot.slane %v124, %v232
    %v234 = vmul.f32 %v224, %v233
    %v235 = vmul.f32 %v228, %v233
    %v236 = vadd.f32 %v220, %v234
    %v237 = vadd.f32 %v221, %v235
    %238 = vset.pattern.permute.xlu0 6
    %239 = vperm.xlu0 %238, %v126
    %v240 = vpop.permute.xlu0 %239
    %242 = vset.pattern.permute.xlu0 6
    %243 = vperm.xlu0 %242, %v127
    %v244 = vpop.permute.xlu0 %243
    %v246 = vlaneseq
    %v247 = vshrl.u32 %v246, 7
    %v248 = vsub.s32 6, %v247
    %v249 = vrot.slane %v124, %v248
    %v250 = vmul.f32 %v240, %v249
    %v251 = vmul.f32 %v244, %v249
    %v252 = vadd.f32 %v236, %v250
    %v253 = vadd.f32 %v237, %v251
    %254 = vset.pattern.permute.xlu0 7
    %255 = vperm.xlu0 %254, %v126
    %v256 = vpop.permute.xlu0 %255
    %258 = vset.pattern.permute.xlu0 7
    %259 = vperm.xlu0 %258, %v127
    %v260 = vpop.permute.xlu0 %259
    %v262 = vlaneseq
    %v263 = vshrl.u32 %v262, 7
    %v264 = vsub.s32 7, %v263
    %v265 = vrot.slane %v124, %v264
    %v266 = vmul.f32 %v256, %v265
    %v267 = vmul.f32 %v260, %v265
    %v268 = vadd.f32 %v252, %v266
    %v269 = vadd.f32 %v253, %v267
    %270 = vset.pattern.permute.xlu0 8
    %271 = vperm.xlu0 %270, %v126
    %v272 = vpop.permute.xlu0 %271
    %274 = vset.pattern.permute.xlu0 8
    %275 = vperm.xlu0 %274, %v127
    %v276 = vpop.permute.xlu0 %275
    %v278 = vlaneseq
    %v279 = vshrl.u32 %v278, 7
    %v280 = vsub.s32 0, %v279
    %v281 = vrot.slane %v125, %v280
    %v282 = vmul.f32 %v272, %v281
    %v283 = vmul.f32 %v276, %v281
    %v284 = vadd.f32 %v268, %v282
    %v285 = vadd.f32 %v269, %v283
    %286 = vset.pattern.permute.xlu0 9
    %287 = vperm.xlu0 %286, %v126
    %v288 = vpop.permute.xlu0 %287
    %290 = vset.pattern.permute.xlu0 9
    %291 = vperm.xlu0 %290, %v127
    %v292 = vpop.permute.xlu0 %291
    %v294 = vlaneseq
    %v295 = vshrl.u32 %v294, 7
    %v296 = vsub.s32 1, %v295
    %v297 = vrot.slane %v125, %v296
    %v298 = vmul.f32 %v288, %v297
    %v299 = vmul.f32 %v292, %v297
    %v300 = vadd.f32 %v284, %v298
    %v301 = vadd.f32 %v285, %v299
    %v302 = vmax.f32 %v300, 0.0
    %v303 = vmax.f32 %v301, 0.0
    %v304 = vld [vmem:[%s5] sm:$0x3]
    %v305 = vld [vmem:[%s6] sm:$0x3]
    %307 = vset.pattern.permute.xlu0 0
    %308 = vperm.xlu0 %307, %v304
    %v309 = vpop.permute.xlu0 %308
    %v311 = vlaneseq
    %v312 = vshrl.u32 %v311, 7
    %v313 = vsub.s32 0, %v312
    %v314 = vrot.slane %v302, %v313
    %v315 = vmul.f32 %v309, %v314
    %317 = vset.pattern.permute.xlu0 0
    %318 = vperm.xlu0 %317, %v305
    %v319 = vpop.permute.xlu0 %318
    %v321 = vadd.f32 %v319, %v315
    %322 = vset.pattern.permute.xlu0 1
    %323 = vperm.xlu0 %322, %v304
    %v324 = vpop.permute.xlu0 %323
    %v326 = vlaneseq
    %v327 = vshrl.u32 %v326, 7
    %v328 = vsub.s32 1, %v327
    %v329 = vrot.slane %v302, %v328
    %v330 = vmul.f32 %v324, %v329
    %v331 = vadd.f32 %v321, %v330
    %332 = vset.pattern.permute.xlu0 2
    %333 = vperm.xlu0 %332, %v304
    %v334 = vpop.permute.xlu0 %333
    %v336 = vlaneseq
    %v337 = vshrl.u32 %v336, 7
    %v338 = vsub.s32 2, %v337
    %v339 = vrot.slane %v302, %v338
    %v340 = vmul.f32 %v334, %v339
    %v341 = vadd.f32 %v331, %v340
    %342 = vset.pattern.permute.xlu0 3
    %343 = vperm.xlu0 %342, %v304
    %v344 = vpop.permute.xlu0 %343
    %v346 = vlaneseq
    %v347 = vshrl.u32 %v346, 7
    %v348 = vsub.s32 3, %v347
    %v349 = vrot.slane %v302, %v348
    %v350 = vmul.f32 %v344, %v349
    %v351 = vadd.f32 %v341, %v350
    %352 = vset.pattern.permute.xlu0 4
    %353 = vperm.xlu0 %352, %v304
    %v354 = vpop.permute.xlu0 %353
    %v356 = vlaneseq
    %v357 = vshrl.u32 %v356, 7
    %v358 = vsub.s32 4, %v357
    %v359 = vrot.slane %v302, %v358
    %v360 = vmul.f32 %v354, %v359
    %v361 = vadd.f32 %v351, %v360
    %362 = vset.pattern.permute.xlu0 5
    %363 = vperm.xlu0 %362, %v304
    %v364 = vpop.permute.xlu0 %363
    %v366 = vlaneseq
    %v367 = vshrl.u32 %v366, 7
    %v368 = vsub.s32 5, %v367
    %v369 = vrot.slane %v302, %v368
    %v370 = vmul.f32 %v364, %v369
    %v371 = vadd.f32 %v361, %v370
    %372 = vset.pattern.permute.xlu0 6
    %373 = vperm.xlu0 %372, %v304
    %v374 = vpop.permute.xlu0 %373
    %v376 = vlaneseq
    %v377 = vshrl.u32 %v376, 7
    %v378 = vsub.s32 6, %v377
    %v379 = vrot.slane %v302, %v378
    %v380 = vmul.f32 %v374, %v379
    %v381 = vadd.f32 %v371, %v380
    %382 = vset.pattern.permute.xlu0 7
    %383 = vperm.xlu0 %382, %v304
    %v384 = vpop.permute.xlu0 %383
    %v386 = vlaneseq
    %v387 = vshrl.u32 %v386, 7
    %v388 = vsub.s32 7, %v387
    %v389 = vrot.slane %v302, %v388
    %v390 = vmul.f32 %v384, %v389
    %v391 = vadd.f32 %v381, %v390
    %392 = vset.pattern.permute.xlu0 8
    %393 = vperm.xlu0 %392, %v304
    %v394 = vpop.permute.xlu0 %393
    %v396 = vlaneseq
    %v397 = vshrl.u32 %v396, 7
    %v398 = vsub.s32 0, %v397
    %v399 = vrot.slane %v303, %v398
    %v400 = vmul.f32 %v394, %v399
    %v401 = vadd.f32 %v391, %v400
    %402 = vset.pattern.permute.xlu0 9
    %403 = vperm.xlu0 %402, %v304
    %v404 = vpop.permute.xlu0 %403
    %v406 = vlaneseq
    %v407 = vshrl.u32 %v406, 7
    %v408 = vsub.s32 1, %v407
    %v409 = vrot.slane %v303, %v408
    %v410 = vmul.f32 %v404, %v409
    %v411 = vadd.f32 %v401, %v410
    %v412 = vtanh.pop %v411
    %v413 = vmul.f32 %v412, 10.0
    %vm414 = vcmask 58368
    %415 = vst.msk [vmem:[#allocation2] sm:$0x3] %vm414, %v413
    // Predicated region
    $region30: #{neural_network_forward.1} parent=1 // pred_check
      _
    $region31: #{neural_network_forward.1} parent=1 // pred_check_branch
      %417 = sbr.rel (0) target = $region33
    $region32: #{neural_network_forward.1} parent=1 // pred_region
      %s419 = ssub.s32 32, 32
      %420 = vsyncadd [#allocation3], %s419
      %s422 = sshll.u32 [#allocation2], 4
      %s423 = int_to_ptr.vmem [resolvable:$true] %s422
      %425 = dma.vmem_to_hbm [thread:$0]  %s423, 32, %s7, [#allocation3]
    $region33: #{neural_network_forward.1} parent=1 // pred_fallthru
      _
    // Predicated region
    $region34: #{neural_network_forward.1} parent=1 // pred_check
      _
    $region35: #{neural_network_forward.1} parent=1 // pred_check_branch
      %427 = sbr.rel (0) target = $region37
    $region36: #{neural_network_forward.1} parent=1 // pred_region
      %428 = dma.done [#allocation3], 32
    $region37: #{neural_network_forward.1} parent=1 // pred_fallthru
      _
    %429 = vsyncpa [#allocation3], 1

</llo_original>
